<compile_context>
chip_gen: v7x
topology: tpu7x:2x2x1
jax: 0.10.0
libtpu: 0.0.40
codegen_flags: <defaults>
</compile_context>

<pallas_src>
import hashlib

import jax
import jax.numpy as jnp
import numpy as np
from jax.experimental import pallas as pl
from jax.experimental.pallas import tpu as pltpu


def _round_up(x: int, m: int) -> int:
    return (x + m - 1) // m * m


def _make_hash_embedding_kernel(S: int, TB: int, TK: int, TC: int,
                                nk: int, use_act: bool):
    """Kernel for one (batch-tile, K-tile) grid point."""
    n_chunks = TK // TC

    def kernel(act_ref, ids_ref, emb_ref, out_ref):
        k = pl.program_id(1)

        # Initialize the resident output block on the first K tile.
        @pl.when(k == 0)
        def _():
            out_ref[...] = jnp.zeros_like(out_ref)

        def compute():
            ids = ids_ref[...]                       # (TB, S) int32
            base = k * TK

            def do_chunk(c):
                off = c * TC
                if not isinstance(c, int):
                    off = pl.multiple_of(off, TC)
                # Bucket id held by each lane of this column chunk (hoisted
                # out of the S loop).
                lane = (base + off
                        + jax.lax.broadcasted_iota(jnp.int32, (TB, TC), 1))
                cnt = jnp.zeros((TB, TC), jnp.int32)
                if S <= 32:
                    # Tiny S: full static unroll.
                    for s in range(S):
                        cnt = cnt + (ids[:, s:s + 1] == lane).astype(jnp.int32)
                else:
                    # Long S: bounded live ranges + LLO visibility.
                    def sbody(s, acc):
                        col = jax.lax.dynamic_slice_in_dim(ids, s, 1, axis=1)
                        return acc + (col == lane).astype(jnp.int32)
                    cnt = jax.lax.fori_loop(0, S, sbody, cnt, unroll=8)

                w = emb_ref[pl.ds(off, TC), :]       # (TC, D_pad)
                # Single cast of the counts, single MXU matmul per chunk,
                # accumulated into the resident f32 output block.
                out_ref[...] += jnp.dot(cnt.astype(w.dtype), w,
                                        preferred_element_type=jnp.float32)

            if n_chunks <= 8:
                for c in range(n_chunks):
                    do_chunk(c)
            else:
                @pl.loop(0, n_chunks)
                def _(c):
                    do_chunk(c)

        if use_act:
            # Skip the (VALU-bound) counts loop + matmul for K tiles that no
            # id in this batch tile falls into.
            active = act_ref[pl.program_id(0) * nk + k] > 0
            pl.when(active)(compute)
        else:
            compute()

    return kernel


def hash_embedding_forward(hashed_ids: jax.Array,
                           emb_weight: jax.Array,
                           table_dtype=jnp.float32) -> jax.Array:
    """hashed_ids: [B, S] int32 already mapped into [0, bucket_size).
       emb_weight: [bucket_size, D] float32.
       returns:    [B, D] float32 (sum of the S embeddings per batch row)."""
    B, S = hashed_ids.shape
    K, D = emb_weight.shape
    table_dtype = jnp.dtype(table_dtype)
    itemsize = table_dtype.itemsize

    # --- tiling --------------------------------------------------------------
    TB = min(128, _round_up(B, 8))            # large batch tile
    B_pad = _round_up(B, TB)
    D_pad = _round_up(D, 128)                 # lane-dense output store
    K_pad = _round_up(K, 128)

    table_bytes = K_pad * D_pad * itemsize
    if table_bytes <= (4 << 20):
        TK = K_pad                            # resident table block: constant
    elif K_pad % 512 == 0:                    # block index -> DMA'd once total
        TK = 512
    elif K_pad % 256 == 0:
        TK = 256
    else:
        TK = 128

    # vreg-aware column chunk: TB * TC * 4 bytes <= 64 KiB (16 vregs).
    TC = min(TK, 512, max(128, (16384 // TB) // 128 * 128))
    while TK % TC != 0:
        TC -= 128

    nb = B_pad // TB
    nk = K_pad // TK

    # --- padding (skipped when already aligned) ------------------------------
    ids = hashed_ids.astype(jnp.int32)
    if B_pad != B:
        # -1 matches no bucket -> padded rows contribute exactly 0.
        ids = jnp.pad(ids, ((0, B_pad - B), (0, 0)), constant_values=-1)
    emb = emb_weight.astype(table_dtype)
    if K_pad != K or D_pad != D:
        # Explicit zero rows/cols so padded K/D regions contribute exactly 0.
        emb = jnp.pad(emb, ((0, K_pad - K), (0, D_pad - D)))

    # --- empty-K-tile activity metadata (scalar prefetch) --------------------
    use_act = (nk > 1) and (nb * nk <= 65536)
    if use_act:
        tiles = (jnp.clip(ids, 0, K_pad - 1) // TK).reshape(nb, TB * S)
        act = (jnp.zeros((nb, nk), jnp.int32)
               .at[jnp.arange(nb)[:, None], tiles].add(1)
               .reshape(-1))
    else:
        act = jnp.ones((1,), jnp.int32)       # dummy (kernel ignores it)

    # --- VMEM budget with a generation-aware physical cap --------------------
    needed = (2 * TB * S * 4 + 2 * TK * D_pad * itemsize
              + 2 * TB * D_pad * 4 + (1 << 20))
    try:
        vmem_cap = int(getattr(pltpu.get_tpu_info(), "vmem_capacity_bytes",
                               64 << 20))
    except Exception:
        vmem_cap = 64 << 20                   # v7x floor
    vmem_limit = int(min(max(needed + (4 << 20), 16 << 20),
                         vmem_cap - (8 << 20)))
    vmem_limit = max(vmem_limit, int(needed))

    table_passes = 1 if nk == 1 else nb
    cost = pl.CostEstimate(
        flops=int(2 * B_pad * K_pad * D_pad),
        transcendentals=0,
        bytes_accessed=int(table_passes * K_pad * D_pad * itemsize
                           + B_pad * S * 4 + B_pad * D_pad * 4),
    )

    kernel = _make_hash_embedding_kernel(S, TB, TK, TC, nk, use_act)

    out_p = pl.pallas_call(
        kernel,
        out_shape=jax.ShapeDtypeStruct((B_pad, D_pad), jnp.float32),
        grid_spec=pltpu.PrefetchScalarGridSpec(
            num_scalar_prefetch=1,
            grid=(nb, nk),                                   # reduction axis last
            in_specs=[
                pl.BlockSpec((TB, S), lambda b, k, act: (b, 0)),      # ids
                pl.BlockSpec((TK, D_pad), lambda b, k, act: (k, 0)),  # table
            ],
            out_specs=pl.BlockSpec((TB, D_pad), lambda b, k, act: (b, 0)),
        ),
        compiler_params=pltpu.CompilerParams(
            dimension_semantics=("parallel", "arbitrary"),
            vmem_limit_bytes=vmem_limit,
        ),
        cost_estimate=cost,
    )(act, ids, emb)

    return out_p[:B, :D]


def md5_hash_buckets(key: int, bucket_size: int) -> int:
    """Exact replica of HashEmbedding.hash_buckets (default hash func)."""
    md5 = hashlib.md5()
    md5.update(str(int(key)).encode("utf-8"))
    return int(md5.hexdigest(), 16) % bucket_size


def apply_hash(x: np.ndarray, bucket_size: int) -> np.ndarray:
    # Host-side elementwise md5 hashing (Tensor.map_ equivalent).
    flat = [md5_hash_buckets(int(k), bucket_size) for k in x.reshape(-1)]
    return np.asarray(flat, dtype=np.int32).reshape(x.shape)


if __name__ == "__main__":
    bucket_size = 64
    embedding_dim = 32
    batch, seq = 2, 8

    key = jax.random.PRNGKey(0)
    k_x, k_emb = jax.random.split(key)

    # Integer "keys" to be hashed into buckets (arbitrary positive ints).
    x = jax.random.randint(k_x, (batch, seq), minval=0, maxval=1000,
                           dtype=jnp.int32)

    # Embedding weight: nn.Embedding default init is N(0, 1).
    emb_weight = jax.random.normal(k_emb, (bucket_size, embedding_dim),
                                   dtype=jnp.float32)

    # Host-side hashing (matches Tensor.map_ + md5 default hash exactly).
    hashed = jnp.asarray(apply_hash(np.asarray(x), bucket_size))

    out = hash_embedding_forward(hashed, emb_weight)
    out = jax.block_until_ready(out)

    # Pure-JAX reference: embedding lookup + sum over seq.
    ref = jnp.take(emb_weight, hashed, axis=0).sum(axis=1)
    assert out.shape == (batch, embedding_dim)
    np.testing.assert_allclose(np.asarray(out), np.asarray(ref),
                               rtol=1e-5, atol=1e-5)

    print("KERNEL_OK")
</pallas_src>

<mosaic_0001>
module attributes {stable_mosaic.version = 11 : i64} {
  func.func @kernel(%arg0: i32, %arg1: i32, %arg2: memref<1xi32, #tpu.memory_space<smem>>, %arg3: memref<8x8xi32, #tpu.memory_space<vmem>>, %arg4: memref<128x128xf32, #tpu.memory_space<vmem>>, %arg5: memref<8x128xf32, #tpu.memory_space<vmem>>) attributes {dimension_semantics = [#tpu.dimension_semantics<parallel>, #tpu.dimension_semantics<arbitrary>], iteration_bounds = array<i64: 1, 1>, scalar_prefetch = 1 : i64, scratch_operands = 0 : i64, tpu.core_type = #tpu.core_type<tc>, window_params = [{transform_indices = @transform_0, window_bounds = array<i64: 8, 8>}, {transform_indices = @transform_1, window_bounds = array<i64: 128, 128>}, {transform_indices = @transform_2, window_bounds = array<i64: 8, 128>}]} {
    %c0_i32 = arith.constant 0 : i32
    %0 = arith.cmpi eq, %arg1, %c0_i32 : i32
    %1 = arith.extui %0 : i1 to i32
    %c0_i32_0 = arith.constant 0 : i32
    %2 = arith.cmpi ne, %1, %c0_i32_0 : i32
    scf.if %2 {
      %cst_10 = arith.constant 0.000000e+00 : f32
      %56 = vector.broadcast %cst_10 : f32 to vector<8x128xf32>
      %c0_11 = arith.constant 0 : index
      %c0_12 = arith.constant 0 : index
      %57 = vector.load %arg5[%c0_11, %c0_12] : memref<8x128xf32, #tpu.memory_space<vmem>>, vector<8x128xf32>
      tpu.vector_store %arg5[%c0_11, %c0_12], %56 {strides = array<i32>} : memref<8x128xf32, #tpu.memory_space<vmem>>, vector<8x128xf32>,
    } else {
    }
    %c0 = arith.constant 0 : index
    %c0_1 = arith.constant 0 : index
    %3 = vector.load %arg3[%c0, %c0_1] : memref<8x8xi32, #tpu.memory_space<vmem>>, vector<8x8xi32>
    %c128_i32 = arith.constant 128 : i32
    %4 = arith.muli %arg1, %c128_i32 : i32
    %c0_i32_2 = arith.constant 0 : i32
    %5 = arith.addi %4, %c0_i32_2 : i32
    %6 = tpu.iota {dimensions = array<i32: 1>} : vector<8x128xi32>
    %7 = vector.broadcast %5 : i32 to vector<8x128xi32>
    %8 = arith.addi %7, %6 : vector<8x128xi32>
    %c0_i32_3 = arith.constant 0 : i32
    %9 = vector.broadcast %c0_i32_3 : i32 to vector<8x128xi32>
    %10 = vector.extract_strided_slice %3 {offsets = [0, 0], sizes = [8, 1], strides = [1, 1]} : vector<8x8xi32> to vector<8x1xi32>
    %11 = vector.broadcast %10 : vector<8x1xi32> to vector<8x128xi32>
    %12 = arith.cmpi eq, %11, %8 : vector<8x128xi32>
    %13 = arith.extui %12 : vector<8x128xi1> to vector<8x128xi32>
    %14 = arith.addi %9, %13 : vector<8x128xi32>
    %15 = vector.extract_strided_slice %3 {offsets = [0, 1], sizes = [8, 1], strides = [1, 1]} : vector<8x8xi32> to vector<8x1xi32>
    %16 = vector.broadcast %15 : vector<8x1xi32> to vector<8x128xi32>
    %17 = arith.cmpi eq, %16, %8 : vector<8x128xi32>
    %18 = arith.extui %17 : vector<8x128xi1> to vector<8x128xi32>
    %19 = arith.addi %14, %18 : vector<8x128xi32>
    %20 = vector.extract_strided_slice %3 {offsets = [0, 2], sizes = [8, 1], strides = [1, 1]} : vector<8x8xi32> to vector<8x1xi32>
    %21 = vector.broadcast %20 : vector<8x1xi32> to vector<8x128xi32>
    %22 = arith.cmpi eq, %21, %8 : vector<8x128xi32>
    %23 = arith.extui %22 : vector<8x128xi1> to vector<8x128xi32>
    %24 = arith.addi %19, %23 : vector<8x128xi32>
    %25 = vector.extract_strided_slice %3 {offsets = [0, 3], sizes = [8, 1], strides = [1, 1]} : vector<8x8xi32> to vector<8x1xi32>
    %26 = vector.broadcast %25 : vector<8x1xi32> to vector<8x128xi32>
    %27 = arith.cmpi eq, %26, %8 : vector<8x128xi32>
    %28 = arith.extui %27 : vector<8x128xi1> to vector<8x128xi32>
    %29 = arith.addi %24, %28 : vector<8x128xi32>
    %30 = vector.extract_strided_slice %3 {offsets = [0, 4], sizes = [8, 1], strides = [1, 1]} : vector<8x8xi32> to vector<8x1xi32>
    %31 = vector.broadcast %30 : vector<8x1xi32> to vector<8x128xi32>
    %32 = arith.cmpi eq, %31, %8 : vector<8x128xi32>
    %33 = arith.extui %32 : vector<8x128xi1> to vector<8x128xi32>
    %34 = arith.addi %29, %33 : vector<8x128xi32>
    %35 = vector.extract_strided_slice %3 {offsets = [0, 5], sizes = [8, 1], strides = [1, 1]} : vector<8x8xi32> to vector<8x1xi32>
    %36 = vector.broadcast %35 : vector<8x1xi32> to vector<8x128xi32>
    %37 = arith.cmpi eq, %36, %8 : vector<8x128xi32>
    %38 = arith.extui %37 : vector<8x128xi1> to vector<8x128xi32>
    %39 = arith.addi %34, %38 : vector<8x128xi32>
    %40 = vector.extract_strided_slice %3 {offsets = [0, 6], sizes = [8, 1], strides = [1, 1]} : vector<8x8xi32> to vector<8x1xi32>
    %41 = vector.broadcast %40 : vector<8x1xi32> to vector<8x128xi32>
    %42 = arith.cmpi eq, %41, %8 : vector<8x128xi32>
    %43 = arith.extui %42 : vector<8x128xi1> to vector<8x128xi32>
    %44 = arith.addi %39, %43 : vector<8x128xi32>
    %45 = vector.extract_strided_slice %3 {offsets = [0, 7], sizes = [8, 1], strides = [1, 1]} : vector<8x8xi32> to vector<8x1xi32>
    %46 = vector.broadcast %45 : vector<8x1xi32> to vector<8x128xi32>
    %47 = arith.cmpi eq, %46, %8 : vector<8x128xi32>
    %48 = arith.extui %47 : vector<8x128xi1> to vector<8x128xi32>
    %49 = arith.addi %44, %48 : vector<8x128xi32>
    %c0_4 = arith.constant 0 : index
    %c0_5 = arith.constant 0 : index
    %50 = vector.load %arg4[%c0_4, %c0_5] : memref<128x128xf32, #tpu.memory_space<vmem>>, vector<128x128xf32>
    %c0_6 = arith.constant 0 : index
    %c0_7 = arith.constant 0 : index
    %51 = vector.load %arg5[%c0_6, %c0_7] : memref<8x128xf32, #tpu.memory_space<vmem>>, vector<8x128xf32>
    %52 = arith.sitofp %49 : vector<8x128xi32> to vector<8x128xf32>
    %cst = arith.constant dense<0.000000e+00> : vector<8x128xf32>
    %53 = tpu.matmul %52, %50, %cst {dimension_numbers = #tpu.dot_dimension_numbers<[1], [0], [0], [1], [0, 0, 1, 1], [], []>} : vector<8x128xf32>, vector<128x128xf32>, vector<8x128xf32> -> vector<8x128xf32>
    %54 = arith.addf %51, %53 : vector<8x128xf32>
    %c0_8 = arith.constant 0 : index
    %c0_9 = arith.constant 0 : index
    %55 = vector.load %arg5[%c0_8, %c0_9] : memref<8x128xf32, #tpu.memory_space<vmem>>, vector<8x128xf32>
    tpu.vector_store %arg5[%c0_8, %c0_9], %54 {strides = array<i32>} : memref<8x128xf32, #tpu.memory_space<vmem>>, vector<8x128xf32>,
    return
  }
  func.func @transform_0(%arg0: i32, %arg1: i32, %arg2: memref<1xi32, #tpu.memory_space<smem>>) -> (i32, i32) {
    %c0_i32 = arith.constant 0 : i32
    %c0_i32_0 = arith.constant 0 : i32
    return %arg0, %c0_i32 : i32, i32
  }
  func.func @transform_1(%arg0: i32, %arg1: i32, %arg2: memref<1xi32, #tpu.memory_space<smem>>) -> (i32, i32) {
    %c0_i32 = arith.constant 0 : i32
    %c0_i32_0 = arith.constant 0 : i32
    return %arg1, %c0_i32 : i32, i32
  }
  func.func @transform_2(%arg0: i32, %arg1: i32, %arg2: memref<1xi32, #tpu.memory_space<smem>>) -> (i32, i32) {
    %c0_i32 = arith.constant 0 : i32
    %c0_i32_0 = arith.constant 0 : i32
    return %arg0, %c0_i32 : i32, i32
  }
}

</mosaic_0001>

<llo_original>
// kernel: tpu_custom_call.1
$region0: #{tpu_custom_call.1}
  #allocation0 [shape = 'u32[]', space=smem, size = 0x4, offset = 0x4, fixed_abs, tag = 'smem constant byte address 0x4 - core index']
  #allocation1 [shape = 'u32[144,128]{1,0:T(1,128)}', space=vmem, size = 0x12000, scoped, tag = 'internal scratch']
  #allocation2 [shape = 's32[1]{0}', space=sflag, size = 0x4, scoped, tag = 'scoped memory for tpu_custom_call.1']
  #allocation3 [shape = 's32[1]{0:T(128)S(6)}', space=smem, size = 0x200, scoped, tag = 'prefetched SMEM operand 0']
  %s0 = inlined_call_operand.<no memory space> [shape: s32[1], index: 0, kind: input, shape index: {}]
  %s1 = inlined_call_operand.hbm [shape: s32[8,8], index: 1, kind: input, shape index: {}]
  %s2 = inlined_call_operand.hbm [shape: f32[128,128], index: 2, kind: input, shape index: {}]
  %s3 = inlined_call_operand.hbm [shape: f32[8,128], index: 3, kind: output, shape index: {}]
  %s4 = sld [smem:[#allocation0]]
  $region30: #{tpu_custom_call.1} parent=0
    _
  %s6 = ssub.s32 1, %s4
  %s7 = scalar_select 0, %s6, %s4
  %8 = sst [smem:[#allocation3]] %s0
  $region1: #{tpu_custom_call.1} parent=0
    #allocation4 [shape = 'u8[4096]{0}', space=vmem, size = 0x1000, scoped, tag = 'input window, operand 1, single buffered']
    #allocation5 [shape = 's32[1]{0}', space=sflag, size = 0x4, scoped, tag = 'scoped memory for tpu_custom_call.1']
    #allocation6 [shape = 's32[1]{0}', space=sflag, size = 0x4, scoped, tag = 'scoped memory for tpu_custom_call.1']
    #allocation7 [shape = 'u8[65536]{0}', space=vmem, size = 0x10000, scoped, tag = 'input window, operand 2, single buffered']
    #allocation8 [shape = 's32[1]{0}', space=sflag, size = 0x4, scoped, tag = 'scoped memory for tpu_custom_call.1']
    #allocation9 [shape = 'u8[4096]{0}', space=vmem, size = 0x1000, scoped, tag = 'output window, operand 0, single buffered']
    %9 = vsyncpa [#allocation5], 0
    %10 = vsyncpa [#allocation8], 0
    %11 = vsyncpa [#allocation6], 0
    // Predicated region
    $region2: #{tpu_custom_call.1} parent=1 // pred_check
      _
    $region3: #{tpu_custom_call.1} parent=1 // pred_check_branch
      %13 = sbr.rel (0) target = $region5
    $region4: #{tpu_custom_call.1} parent=1 // pred_region
      %s15 = ssub.s32 128, 128
      %16 = vsyncadd [#allocation5], %s15
      %s18 = sshll.u32 [#allocation4], 4
      %s19 = int_to_ptr.vmem [resolvable:$true] %s18
      %21 = dma.hbm_to_vmem [thread:$0]  %s1, 128, %s19, [#allocation5]
    $region5: #{tpu_custom_call.1} parent=1 // pred_fallthru
      _
    // Predicated region
    $region6: #{tpu_custom_call.1} parent=1 // pred_check
      _
    $region7: #{tpu_custom_call.1} parent=1 // pred_check_branch
      %23 = sbr.rel (0) target = $region9
    $region8: #{tpu_custom_call.1} parent=1 // pred_region
      %s25 = ssub.s32 2048, 2048
      %26 = vsyncadd [#allocation8], %s25
      %s27 = sshll.u32 [#allocation7], 4
      %s28 = int_to_ptr.vmem [resolvable:$true] %s27
      %33 = dma.hbm_to_vmem [thread:$0]  %s2, 2048, %s28, [#allocation8], 128, 128, 8
    $region9: #{tpu_custom_call.1} parent=1 // pred_fallthru
      _
    // Predicated region
    $region10: #{tpu_custom_call.1} parent=1 // pred_check
      _
    $region11: #{tpu_custom_call.1} parent=1 // pred_check_branch
      %35 = sbr.rel (0) target = $region13
    $region12: #{tpu_custom_call.1} parent=1 // pred_region
      %36 = dma.done [#allocation5], 128
    $region13: #{tpu_custom_call.1} parent=1 // pred_fallthru
      _
    // Predicated region
    $region14: #{tpu_custom_call.1} parent=1 // pred_check
      _
    $region15: #{tpu_custom_call.1} parent=1 // pred_check_branch
      %38 = sbr.rel (0) target = $region17
    $region16: #{tpu_custom_call.1} parent=1 // pred_region
      %39 = dma.done [#allocation8], 2048
    $region17: #{tpu_custom_call.1} parent=1 // pred_fallthru
      _
    %p40 = scmp.eq.s32.totalorder 0, 0
    // Predicated region
    $region18: #{tpu_custom_call.1} parent=1 // pred_check
      %p41 = pneg %p40
    $region19: #{tpu_custom_call.1} parent=1 // pred_check_branch
      %43 = sbr.rel (%p41) target = $region21
    $region20: #{tpu_custom_call.1} parent=1 // pred_region
      %44 = vst [vmem:[#allocation9] sm:$0xff] 0.0
    $region21: #{tpu_custom_call.1} parent=1 // pred_fallthru
      _
    %v45 = vld [vmem:[#allocation4] sm:$0xff]
    %s46 = smul.u32 0, 128
    %v47 = vlaneseq
    %v48 = vand.u32 %v47, 127
    %v49 = vstv %s46
    %v50 = vadd.s32 %v49, %v48
    %51 = vset.pattern.permute.xlu0 0
    %52 = vperm.xlu0 %51, %v45
    %v53 = vpop.permute.xlu0 %52
    %vm54 = vcmp.eq.s32.totalorder %v53, %v50
    %v55 = vsel %vm54, 1, 0
    %56 = vset.pattern.permute.xlu0 1
    %57 = vperm.xlu0 %56, %v45
    %v58 = vpop.permute.xlu0 %57
    %vm59 = vcmp.eq.s32.totalorder %v58, %v50
    %v60 = vsel %vm59, 1, 0
    %v61 = vadd.s32 %v55, %v60
    %62 = vset.pattern.permute.xlu0 2
    %63 = vperm.xlu0 %62, %v45
    %v64 = vpop.permute.xlu0 %63
    %vm65 = vcmp.eq.s32.totalorder %v64, %v50
    %v66 = vsel %vm65, 1, 0
    %v67 = vadd.s32 %v61, %v66
    %68 = vset.pattern.permute.xlu0 3
    %69 = vperm.xlu0 %68, %v45
    %v70 = vpop.permute.xlu0 %69
    %vm71 = vcmp.eq.s32.totalorder %v70, %v50
    %v72 = vsel %vm71, 1, 0
    %v73 = vadd.s32 %v67, %v72
    %74 = vset.pattern.permute.xlu0 4
    %75 = vperm.xlu0 %74, %v45
    %v76 = vpop.permute.xlu0 %75
    %vm77 = vcmp.eq.s32.totalorder %v76, %v50
    %v78 = vsel %vm77, 1, 0
    %v79 = vadd.s32 %v73, %v78
    %80 = vset.pattern.permute.xlu0 5
    %81 = vperm.xlu0 %80, %v45
    %v82 = vpop.permute.xlu0 %81
    %vm83 = vcmp.eq.s32.totalorder %v82, %v50
    %v84 = vsel %vm83, 1, 0
    %v85 = vadd.s32 %v79, %v84
    %86 = vset.pattern.permute.xlu0 6
    %87 = vperm.xlu0 %86, %v45
    %v88 = vpop.permute.xlu0 %87
    %vm89 = vcmp.eq.s32.totalorder %v88, %v50
    %v90 = vsel %vm89, 1, 0
    %v91 = vadd.s32 %v85, %v90
    %92 = vset.pattern.permute.xlu0 7
    %93 = vperm.xlu0 %92, %v45
    %v94 = vpop.permute.xlu0 %93
    %vm95 = vcmp.eq.s32.totalorder %v94, %v50
    %v96 = vsel %vm95, 1, 0
    %v97 = vadd.s32 %v91, %v96
    %v98 = vld [vmem:[#allocation7] sm:$0xff]
    %v99 = vld [vmem:[#allocation7 + $0x8] sm:$0xff]
    %v100 = vld [vmem:[#allocation7 + $0x10] sm:$0xff]
    %v101 = vld [vmem:[#allocation7 + $0x18] sm:$0xff]
    %v102 = vld [vmem:[#allocation7 + $0x20] sm:$0xff]
    %v103 = vld [vmem:[#allocation7 + $0x28] sm:$0xff]
    %v104 = vld [vmem:[#allocation7 + $0x30] sm:$0xff]
    %v105 = vld [vmem:[#allocation7 + $0x38] sm:$0xff]
    %v106 = vld [vmem:[#allocation7 + $0x40] sm:$0xff]
    %v107 = vld [vmem:[#allocation7 + $0x48] sm:$0xff]
    %v108 = vld [vmem:[#allocation7 + $0x50] sm:$0xff]
    %v109 = vld [vmem:[#allocation7 + $0x58] sm:$0xff]
    %v110 = vld [vmem:[#allocation7 + $0x60] sm:$0xff]
    %v111 = vld [vmem:[#allocation7 + $0x68] sm:$0xff]
    %v112 = vld [vmem:[#allocation7 + $0x70] sm:$0xff]
    %v113 = vld [vmem:[#allocation7 + $0x78] sm:$0xff]
    %v114 = vld [vmem:[#allocation9] sm:$0xff]
    %v115 = vcvt.s32.f32 %v97
    %116 = vmatprep.subr.mxu0 0.0
    %117 = vmatpush1.msra.mxu0 %v98
    %118 = vmatprep.subr.mxu0 0.0
    %119 = vmatpush1.msra.mxu0 %v99
    %120 = vmatprep.subr.mxu0 0.0
    %121 = vmatpush1.msra.mxu0 %v100
    %122 = vmatprep.subr.mxu0 0.0
    %123 = vmatpush1.msra.mxu0 %v101
    %124 = vmatprep.subr.mxu0 0.0
    %125 = vmatpush1.msra.mxu0 %v102
    %126 = vmatprep.subr.mxu0 0.0
    %127 = vmatpush1.msra.mxu0 %v103
    %128 = vmatprep.subr.mxu0 0.0
    %129 = vmatpush1.msra.mxu0 %v104
    %130 = vmatprep.subr.mxu0 0.0
    %131 = vmatpush1.msra.mxu0 %v105
    %132 = vmatprep.subr.mxu0 0.0
    %133 = vmatpush1.msra.mxu0 %v106
    %134 = vmatprep.subr.mxu0 0.0
    %135 = vmatpush1.msra.mxu0 %v107
    %136 = vmatprep.subr.mxu0 0.0
    %137 = vmatpush1.msra.mxu0 %v108
    %138 = vmatprep.subr.mxu0 0.0
    %139 = vmatpush1.msra.mxu0 %v109
    %140 = vmatprep.subr.mxu0 0.0
    %141 = vmatpush1.msra.mxu0 %v110
    %142 = vmatprep.subr.mxu0 0.0
    %143 = vmatpush1.msra.mxu0 %v111
    %144 = vmatprep.subr.mxu0 0.0
    %145 = vmatpush1.msra.mxu0 %v112
    %146 = vmatprep.subr.mxu0 0.0
    %147 = vmatpush1.msra.mxu0 %v113
    %148 = vmatprep.subr.mxu0 0.0
    %149 = vmatpush1.msra.mxu0 0.0
    %150 = vmatprep.subr.mxu0 0.0
    %151 = vmatpush1.msra.mxu0 0.0
    %152 = vmatprep.subr.mxu0 0.0
    %153 = vmatpush1.msra.mxu0 0.0
    %154 = vmatprep.subr.mxu0 0.0
    %155 = vmatpush1.msra.mxu0 0.0
    %156 = vmatprep.subr.mxu0 0.0
    %157 = vmatpush1.msra.mxu0 0.0
    %158 = vmatprep.subr.mxu0 0.0
    %159 = vmatpush1.msra.mxu0 0.0
    %160 = vmatprep.subr.mxu0 0.0
    %161 = vmatpush1.msra.mxu0 0.0
    %162 = vmatprep.subr.mxu0 0.0
    %163 = vmatpush1.msra.mxu0 0.0
    %164 = vmatprep.subr.mxu0 0.0
    %165 = vmatpush1.msra.mxu0 0.0
    %166 = vmatprep.subr.mxu0 0.0
    %167 = vmatpush1.msra.mxu0 0.0
    %168 = vmatprep.subr.mxu0 0.0
    %169 = vmatpush1.msra.mxu0 0.0
    %170 = vmatprep.subr.mxu0 0.0
    %171 = vmatpush1.msra.mxu0 0.0
    %172 = vmatprep.subr.mxu0 0.0
    %173 = vmatpush1.msra.mxu0 0.0
    %174 = vmatprep.subr.mxu0 0.0
    %175 = vmatpush1.msra.mxu0 0.0
    %176 = vmatprep.subr.mxu0 0.0
    %177 = vmatpush1.msra.mxu0 0.0
    %178 = vmatprep.subr.mxu0 0.0
    %179 = vmatpush1.msra.mxu0 0.0
    %180 = vmatprep.mubr.f32.mxu0 0.0
    %181 = vmatmul.mubr.f32.gmra.mrb[0].mxu0 %v115
    %v182 = vpop.f32.mrb[0].mxu0
    %v183 = vadd.f32 0.0, %v182
    %v184 = vpop.f32.mrb[0].mxu0
    %185 = vdwg.mxu0
    %v186 = vadd.f32 %v114, %v183
    %187 = vst [vmem:[#allocation9] sm:$0xff] %v186
    // Predicated region
    $region22: #{tpu_custom_call.1} parent=1 // pred_check
      _
    $region23: #{tpu_custom_call.1} parent=1 // pred_check_branch
      %189 = sbr.rel (0) target = $region25
    $region24: #{tpu_custom_call.1} parent=1 // pred_region
      %s191 = ssub.s32 128, 128
      %192 = vsyncadd [#allocation6], %s191
      %s194 = sshll.u32 [#allocation9], 4
      %s195 = int_to_ptr.vmem [resolvable:$true] %s194
      %197 = dma.vmem_to_hbm [thread:$0]  %s195, 128, %s3, [#allocation6]
    $region25: #{tpu_custom_call.1} parent=1 // pred_fallthru
      _
    // Predicated region
    $region26: #{tpu_custom_call.1} parent=1 // pred_check
      _
    $region27: #{tpu_custom_call.1} parent=1 // pred_check_branch
      %199 = sbr.rel (0) target = $region29
    $region28: #{tpu_custom_call.1} parent=1 // pred_region
      %200 = dma.done [#allocation6], 128
    $region29: #{tpu_custom_call.1} parent=1 // pred_fallthru
      _
    %201 = vsyncpa [#allocation5], 1
    %202 = vsyncpa [#allocation8], 1
    %203 = vsyncpa [#allocation6], 1

</llo_original>
